<compile_context>
chip_gen: v6e
topology: v6e:2x2x1
jax: 0.10.0
libtpu: 0.0.40
codegen_flags: <defaults>
</compile_context>

<pallas_src>
import functools

import jax
import jax.numpy as jnp
from jax.experimental import pallas as pl
from jax.experimental.pallas import tpu as pltpu

_LANE = 128
_SUBLANE = 8


def _round_up(n, m):
    return ((n + m - 1) // m) * m


def _mlp_kernel(x_ref, w1_ref, b1_ref, w2_ref, b2_ref, o_ref, *,
                output_activation, act, approx_recip):
    # In-kernel cast to the MXU dtype (bf16 by default): avoids a separate
    # wrapper-side HBM pass over x (an anti-pattern for a mem-bound kernel).
    x = x_ref[...].astype(w1_ref.dtype)

    # hidden = relu(x @ W1 + b1); MXU accumulates in f32, elementwise math f32.
    h = jnp.dot(x, w1_ref[...], preferred_element_type=jnp.float32)
    h = jnp.maximum(h + b1_ref[...], 0.0)              # b1: (1, embed) broadcast

    # out = output_activation(h @ W2 + b2); W2 is lane-padded to 128 for the
    # MXU / softmax compute, but only the first `act` lanes are real.
    y = jnp.dot(h.astype(w2_ref.dtype), w2_ref[...],
                preferred_element_type=jnp.float32)
    y = y + b2_ref[...]                                 # b2: (1, act_pad) broadcast

    if output_activation == "relu":
        y = jnp.maximum(y, 0.0)
    elif output_activation == "softmax":
        # Mask padded action lanes so they do not contribute to the softmax.
        lane = jax.lax.broadcasted_iota(jnp.int32, y.shape, 1)
        y = jnp.where(lane < act, y, -1e30)
        m = jnp.max(y, axis=-1, keepdims=True)
        e = jnp.exp(y - m)
        y = e * pl.reciprocal(jnp.sum(e, axis=-1, keepdims=True),
                              approx=approx_recip)
    # 'linear' -> identity

    # Store only the real action lanes: the output block is (tB, act), so the
    # HBM writeback is ~32x smaller than a 128-lane-padded f32 slab.
    o_ref[...] = y[:, :act].astype(o_ref.dtype)


def _choose_batch_tile(batch, batch_tile):
    """Batch tile: multiple of 8 sublanes, capped so that whenever B >= 16 the
    grid has >= 2 steps (v7x megacore sharding of the 'parallel' axis)."""
    b8 = _round_up(batch, _SUBLANE)
    tb = min(_round_up(batch_tile, _SUBLANE), b8)
    if b8 >= 2 * _SUBLANE:
        tb = min(tb, _round_up(pl.cdiv(b8, 2), _SUBLANE))
    return max(tb, _SUBLANE)


def mlp_forward(x, w1, b1, w2, b2, *, output_activation="linear",
                batch_tile=2048, mxu_dtype=jnp.bfloat16,
                approx_softmax_recip=False):
    """x: [B, obs], w1: [obs, embed], b1: [embed], w2: [embed, act], b2: [act].

    Weights are stored [in, out] (transposed vs. torch nn.Linear) so the
    kernel does plain x @ W + b on the MXU.
    """
    if output_activation not in ("linear", "relu", "softmax"):
        raise ValueError("Unknwon activation function")  # match torch module

    out_dtype = x.dtype
    B, obs = x.shape
    embed = w1.shape[1]
    act = w2.shape[1]

    # Lane-pad the action dim to 128 for the second matmul / softmax compute
    # ONLY; the output array stays (B, act) so writeback is not inflated.
    act_pad = _round_up(max(act, _LANE), _LANE)

    tB = _choose_batch_tile(B, batch_tile)
    B_pad = _round_up(B, tB)
    n_tiles = B_pad // tB

    # Pad x only when needed (a full HBM pass); callers with tile-aligned B
    # skip it.  The bf16 cast of x happens in-kernel, not here.
    if B_pad != B:
        x = jnp.pad(x, ((0, B_pad - B), (0, 0)))

    # Weights/biases are tiny and VMEM-resident: cast/pad them in the wrapper.
    w1_in = w1.astype(mxu_dtype)
    w2_in = w2.astype(mxu_dtype)
    if act_pad != act:
        w2_in = jnp.pad(w2_in, ((0, 0), (0, act_pad - act)))
        b2 = jnp.pad(b2, ((0, act_pad - act),))
    b1_2d = b1.reshape(1, embed).astype(jnp.float32)
    b2_2d = b2.reshape(1, act_pad).astype(jnp.float32)

    kernel = functools.partial(_mlp_kernel,
                               output_activation=output_activation,
                               act=act,
                               approx_recip=approx_softmax_recip)

    # Deeper pipelining only when tiles are small but the grid is long
    # (latency-sensitive configs); bigger tiles are the preferred lever.
    if n_tiles >= 3 and tB < 512:
        x_spec = pl.BlockSpec((tB, obs), lambda i: (i, 0),
                              pipeline_mode=pl.Buffered(3))
        o_spec = pl.BlockSpec((tB, act), lambda i: (i, 0),
                              pipeline_mode=pl.Buffered(3))
    else:
        x_spec = pl.BlockSpec((tB, obs), lambda i: (i, 0))
        o_spec = pl.BlockSpec((tB, act), lambda i: (i, 0))

    itemsize_in = jnp.dtype(x.dtype).itemsize
    itemsize_out = jnp.dtype(out_dtype).itemsize
    itemsize_w = jnp.dtype(mxu_dtype).itemsize
    cost = pl.CostEstimate(
        flops=2 * B_pad * (obs * embed + embed * act_pad),
        transcendentals=(B_pad * act_pad
                         if output_activation == "softmax" else 0),
        bytes_accessed=(B_pad * obs * itemsize_in
                        + (obs * embed + embed * act_pad) * itemsize_w
                        + (embed + act_pad) * 4
                        + B_pad * act * itemsize_out),
    )

    out = pl.pallas_call(
        kernel,
        out_shape=jax.ShapeDtypeStruct((B_pad, act), out_dtype),
        grid=(n_tiles,),
        in_specs=[
            x_spec,                                          # batch-tiled
            pl.BlockSpec((obs, embed), lambda i: (0, 0)),    # VMEM-resident
            pl.BlockSpec((1, embed), lambda i: (0, 0)),
            pl.BlockSpec((embed, act_pad), lambda i: (0, 0)),
            pl.BlockSpec((1, act_pad), lambda i: (0, 0)),
        ],
        out_specs=o_spec,
        compiler_params=pltpu.CompilerParams(
            dimension_semantics=("parallel",),   # batch tiles are independent
            vmem_limit_bytes=32 * 1024 * 1024,   # headroom on v5e/v6e/v7x
        ),
        cost_estimate=cost,
    )(x, w1_in, b1_2d, w2_in, b2_2d)

    return out if B_pad == B else out[:B]


def _init_linear(key, fan_in, fan_out, dtype=jnp.float32):
    """Deterministic torch-style init: U(-1/sqrt(fan_in), +1/sqrt(fan_in))."""
    kw, kb = jax.random.split(key)
    bound = 1.0 / (fan_in ** 0.5)
    w = jax.random.uniform(kw, (fan_in, fan_out), dtype, minval=-bound, maxval=bound)
    b = jax.random.uniform(kb, (fan_out,), dtype, minval=-bound, maxval=bound)
    return w, b


# TODO(synk): MLP.save_txt is file I/O, not part of the forward pass; not translated.

if __name__ == "__main__":
    # MLP(observation_shape=16, action_shape=4, embed_size=32)
    batch, obs_dim, embed_size, action_dim = 8, 16, 32, 4

    key = jax.random.PRNGKey(0)
    kx, k1, k2, kx2 = jax.random.split(key, 4)

    x = jax.random.normal(kx, (batch, obs_dim), jnp.float32)
    w1, b1 = _init_linear(k1, obs_dim, embed_size)
    w2, b2 = _init_linear(k2, embed_size, action_dim)

    # Pure-JAX reference.
    def ref_forward(xv):
        h = jnp.maximum(xv @ w1 + b1, 0.0)
        return h @ w2 + b2

    ref_lin = ref_forward(x)

    # 1) 'linear' head, explicit f32 MXU path (tight match vs f32 reference).
    out_lin = jax.block_until_ready(
        mlp_forward(x, w1, b1, w2, b2, output_activation="linear",
                    mxu_dtype=jnp.float32))
    assert out_lin.shape == (batch, action_dim)
    assert out_lin.dtype == x.dtype
    assert jnp.allclose(out_lin, ref_lin, atol=1e-5, rtol=1e-5)

    # 2) 'softmax' head, default bf16 MXU inputs, exact reciprocal (rows sum to 1).
    out_sm = jax.block_until_ready(
        mlp_forward(x, w1, b1, w2, b2, output_activation="softmax"))
    ref_sm = jax.nn.softmax(ref_lin, axis=-1)
    assert jnp.allclose(out_sm, ref_sm, atol=3e-2, rtol=3e-2)
    assert jnp.allclose(jnp.sum(out_sm, axis=-1), 1.0, atol=1e-3)

    # 3) 'relu' head, default bf16 MXU inputs with f32 accumulation.
    out_relu = jax.block_until_ready(
        mlp_forward(x, w1, b1, w2, b2, output_activation="relu"))
    ref_relu = jnp.maximum(ref_lin, 0.0)
    assert jnp.allclose(out_relu, ref_relu, atol=5e-2, rtol=5e-2)

    # 4) Non-tile-aligned batch: exercises the padding path and a 2-step
    #    "parallel" grid (B=300 -> tB=152, 2 tiles; shards across v7x cores).
    x_big = jax.random.normal(kx2, (300, obs_dim), jnp.float32)
    out_big = jax.block_until_ready(
        mlp_forward(x_big, w1, b1, w2, b2, output_activation="linear",
                    mxu_dtype=jnp.float32))
    assert out_big.shape == (300, action_dim)
    assert jnp.allclose(out_big, ref_forward(x_big), atol=1e-5, rtol=1e-5)

    print("KERNEL_OK")
</pallas_src>

<mosaic_0001>
module attributes {stable_mosaic.version = 11 : i64} {
  func.func @_mlp_kernel(%arg0: i32, %arg1: memref<8x16xf32, #tpu.memory_space<vmem>>, %arg2: memref<16x32xf32, #tpu.memory_space<vmem>>, %arg3: memref<1x32xf32, #tpu.memory_space<vmem>>, %arg4: memref<32x128xf32, #tpu.memory_space<vmem>>, %arg5: memref<1x128xf32, #tpu.memory_space<vmem>>, %arg6: memref<8x4xf32, #tpu.memory_space<vmem>>) attributes {dimension_semantics = [#tpu.dimension_semantics<parallel>], iteration_bounds = array<i64: 1>, scalar_prefetch = 0 : i64, scratch_operands = 0 : i64, tpu.core_type = #tpu.core_type<tc>, window_params = [{transform_indices = @transform_0, window_bounds = array<i64: 8, 16>}, {pipeline_mode = #tpu.pipeline_mode<synchronous>, transform_indices = @transform_1, window_bounds = array<i64: 16, 32>}, {pipeline_mode = #tpu.pipeline_mode<synchronous>, transform_indices = @transform_2, window_bounds = array<i64: 1, 32>}, {pipeline_mode = #tpu.pipeline_mode<synchronous>, transform_indices = @transform_3, window_bounds = array<i64: 32, 128>}, {pipeline_mode = #tpu.pipeline_mode<synchronous>, transform_indices = @transform_4, window_bounds = array<i64: 1, 128>}, {transform_indices = @transform_5, window_bounds = array<i64: 8, 4>}]} {
    %c0 = arith.constant 0 : index
    %c0_0 = arith.constant 0 : index
    %0 = vector.load %arg1[%c0, %c0_0] : memref<8x16xf32, #tpu.memory_space<vmem>>, vector<8x16xf32>
    %c0_1 = arith.constant 0 : index
    %c0_2 = arith.constant 0 : index
    %1 = vector.load %arg2[%c0_1, %c0_2] : memref<16x32xf32, #tpu.memory_space<vmem>>, vector<16x32xf32>
    %cst = arith.constant dense<0.000000e+00> : vector<8x32xf32>
    %2 = tpu.matmul %0, %1, %cst {dimension_numbers = #tpu.dot_dimension_numbers<[1], [0], [0], [1], [0, 0, 1, 1], [], []>} : vector<8x16xf32>, vector<16x32xf32>, vector<8x32xf32> -> vector<8x32xf32>
    %c0_3 = arith.constant 0 : index
    %c0_4 = arith.constant 0 : index
    %3 = vector.load %arg3[%c0_3, %c0_4] : memref<1x32xf32, #tpu.memory_space<vmem>>, vector<1x32xf32>
    %4 = vector.broadcast %3 : vector<1x32xf32> to vector<8x32xf32>
    %5 = arith.addf %2, %4 : vector<8x32xf32>
    %cst_5 = arith.constant 0.000000e+00 : f32
    %6 = vector.broadcast %cst_5 : f32 to vector<8x32xf32>
    %7 = arith.maximumf %5, %6 : vector<8x32xf32>
    %c0_6 = arith.constant 0 : index
    %c0_7 = arith.constant 0 : index
    %8 = vector.load %arg4[%c0_6, %c0_7] : memref<32x128xf32, #tpu.memory_space<vmem>>, vector<32x128xf32>
    %cst_8 = arith.constant dense<0.000000e+00> : vector<8x128xf32>
    %9 = tpu.matmul %7, %8, %cst_8 {dimension_numbers = #tpu.dot_dimension_numbers<[1], [0], [0], [1], [0, 0, 1, 1], [], []>} : vector<8x32xf32>, vector<32x128xf32>, vector<8x128xf32> -> vector<8x128xf32>
    %c0_9 = arith.constant 0 : index
    %c0_10 = arith.constant 0 : index
    %10 = vector.load %arg5[%c0_9, %c0_10] : memref<1x128xf32, #tpu.memory_space<vmem>>, vector<1x128xf32>
    %11 = vector.broadcast %10 : vector<1x128xf32> to vector<8x128xf32>
    %12 = arith.addf %9, %11 : vector<8x128xf32>
    %13 = vector.extract_strided_slice %12 {offsets = [0, 0], sizes = [8, 4], strides = [1, 1]} : vector<8x128xf32> to vector<8x4xf32>
    %c0_11 = arith.constant 0 : index
    %c0_12 = arith.constant 0 : index
    %14 = vector.load %arg6[%c0_11, %c0_12] : memref<8x4xf32, #tpu.memory_space<vmem>>, vector<8x4xf32>
    tpu.vector_store %arg6[%c0_11, %c0_12], %13 {strides = array<i32>} : memref<8x4xf32, #tpu.memory_space<vmem>>, vector<8x4xf32>,
    return
  }
  func.func @transform_0(%arg0: i32) -> (i32, i32) {
    %c0_i32 = arith.constant 0 : i32
    %c0_i32_0 = arith.constant 0 : i32
    return %arg0, %c0_i32 : i32, i32
  }
  func.func @transform_1(%arg0: i32) -> (i32, i32) {
    %c0_i32 = arith.constant 0 : i32
    %c0_i32_0 = arith.constant 0 : i32
    %c0_i32_1 = arith.constant 0 : i32
    return %c0_i32, %c0_i32_0 : i32, i32
  }
  func.func @transform_2(%arg0: i32) -> (i32, i32) {
    %c0_i32 = arith.constant 0 : i32
    %c0_i32_0 = arith.constant 0 : i32
    %c0_i32_1 = arith.constant 0 : i32
    return %c0_i32, %c0_i32_0 : i32, i32
  }
  func.func @transform_3(%arg0: i32) -> (i32, i32) {
    %c0_i32 = arith.constant 0 : i32
    %c0_i32_0 = arith.constant 0 : i32
    %c0_i32_1 = arith.constant 0 : i32
    return %c0_i32, %c0_i32_0 : i32, i32
  }
  func.func @transform_4(%arg0: i32) -> (i32, i32) {
    %c0_i32 = arith.constant 0 : i32
    %c0_i32_0 = arith.constant 0 : i32
    %c0_i32_1 = arith.constant 0 : i32
    return %c0_i32, %c0_i32_0 : i32, i32
  }
  func.func @transform_5(%arg0: i32) -> (i32, i32) {
    %c0_i32 = arith.constant 0 : i32
    %c0_i32_0 = arith.constant 0 : i32
    return %arg0, %c0_i32 : i32, i32
  }
}

</mosaic_0001>

<llo_original>
// kernel: tpu_custom_call.1
$region0: #{tpu_custom_call.1}
  #allocation0 [shape = 'u32[]', space=smem, size = 0x4, offset = 0x4, fixed_abs, tag = 'smem constant byte address 0x4 - core index']
  #allocation1 [shape = 'u32[144,128]{1,0:T(1,128)}', space=vmem, size = 0x12000, scoped, tag = 'internal scratch']
  %s0 = inlined_call_operand.hbm [shape: f32[8,16], index: 0, kind: input, shape index: {}]
  %s1 = inlined_call_operand.hbm [shape: f32[16,32], index: 1, kind: input, shape index: {}]
  %s2 = inlined_call_operand.vmem [shape: f32[1,32], index: 2, kind: input, shape index: {}]
  %s3 = inlined_call_operand.hbm [shape: f32[32,128], index: 3, kind: input, shape index: {}]
  %s4 = inlined_call_operand.vmem [shape: f32[1,128], index: 4, kind: input, shape index: {}]
  %s5 = inlined_call_operand.vmem [shape: f32[8,4], index: 5, kind: output, shape index: {}]
  %s6 = sld [smem:[#allocation0]]
  $region42: #{tpu_custom_call.1} parent=0
    _
  %s8 = ssub.s32 1, %s6
  %s9 = scalar_select 0, %s8, %s6
  $region1: #{tpu_custom_call.1} parent=0
    #allocation2 [shape = 'u8[4096]{0}', space=vmem, size = 0x1000, scoped, tag = 'input window, operand 0, single buffered']
    #allocation3 [shape = 's32[1]{0}', space=sflag, size = 0x4, scoped, tag = 'scoped memory for tpu_custom_call.1']
    #allocation4 [shape = 'u8[8192]{0}', space=vmem, size = 0x2000, scoped, tag = 'input window, operand 1, single buffered']
    #allocation5 [shape = 's32[1]{0}', space=sflag, size = 0x4, scoped, tag = 'scoped memory for tpu_custom_call.1']
    #allocation6 [shape = 'u8[16384]{0}', space=vmem, size = 0x4000, scoped, tag = 'input window, operand 3, single buffered']
    %10 = vsyncpa [#allocation3], 0
    %11 = vsyncpa [#allocation5], 0
    // Predicated region
    $region2: #{tpu_custom_call.1} parent=1 // pred_check
      _
    $region3: #{tpu_custom_call.1} parent=1 // pred_check_branch
      %13 = sbr.rel (0) target = $region5
    $region4: #{tpu_custom_call.1} parent=1 // pred_region
      %s15 = ssub.s32 128, 128
      %16 = vsyncadd [#allocation3], %s15
      %s18 = sshll.u32 [#allocation2], 4
      %s19 = int_to_ptr.vmem [resolvable:$true] %s18
      %21 = dma.hbm_to_vmem [thread:$0]  %s0, 128, %s19, [#allocation3]
    $region5: #{tpu_custom_call.1} parent=1 // pred_fallthru
      _
    // Predicated region
    $region6: #{tpu_custom_call.1} parent=1 // pred_check
      _
    $region7: #{tpu_custom_call.1} parent=1 // pred_check_branch
      %23 = sbr.rel (0) target = $region9
    $region8: #{tpu_custom_call.1} parent=1 // pred_region
      %s25 = ssub.s32 256, 256
      %26 = vsyncadd [#allocation5], %s25
      %s27 = sshll.u32 [#allocation4], 4
      %s28 = int_to_ptr.vmem [resolvable:$true] %s27
      %33 = dma.hbm_to_vmem [thread:$0]  %s1, 256, %s28, [#allocation5], 128, 128, 8
    $region9: #{tpu_custom_call.1} parent=1 // pred_fallthru
      _
    // Predicated region
    $region10: #{tpu_custom_call.1} parent=1 // pred_check
      _
    $region11: #{tpu_custom_call.1} parent=1 // pred_check_branch
      %35 = sbr.rel (0) target = $region13
    $region12: #{tpu_custom_call.1} parent=1 // pred_region
      _
    $region13: #{tpu_custom_call.1} parent=1 // pred_fallthru
      _
    // Predicated region
    $region14: #{tpu_custom_call.1} parent=1 // pred_check
      _
    $region15: #{tpu_custom_call.1} parent=1 // pred_check_branch
      %37 = sbr.rel (0) target = $region17
    $region16: #{tpu_custom_call.1} parent=1 // pred_region
      %s39 = ssub.s32 512, 512
      %40 = vsyncadd [#allocation5], %s39
      %s41 = sshll.u32 [#allocation6], 4
      %s42 = int_to_ptr.vmem [resolvable:$true] %s41
      %47 = dma.hbm_to_vmem [thread:$0]  %s3, 512, %s42, [#allocation5], 128, 128, 8
    $region17: #{tpu_custom_call.1} parent=1 // pred_fallthru
      _
    // Predicated region
    $region18: #{tpu_custom_call.1} parent=1 // pred_check
      _
    $region19: #{tpu_custom_call.1} parent=1 // pred_check_branch
      %49 = sbr.rel (0) target = $region21
    $region20: #{tpu_custom_call.1} parent=1 // pred_region
      _
    $region21: #{tpu_custom_call.1} parent=1 // pred_fallthru
      _
    // Predicated region
    $region22: #{tpu_custom_call.1} parent=1 // pred_check
      _
    $region23: #{tpu_custom_call.1} parent=1 // pred_check_branch
      %51 = sbr.rel (0) target = $region25
    $region24: #{tpu_custom_call.1} parent=1 // pred_region
      %52 = dma.done [#allocation3], 128
    $region25: #{tpu_custom_call.1} parent=1 // pred_fallthru
      _
    // Predicated region
    $region26: #{tpu_custom_call.1} parent=1 // pred_check
      _
    $region27: #{tpu_custom_call.1} parent=1 // pred_check_branch
      %54 = sbr.rel (0) target = $region29
    $region28: #{tpu_custom_call.1} parent=1 // pred_region
      %55 = dma.done [#allocation5], 256
    $region29: #{tpu_custom_call.1} parent=1 // pred_fallthru
      _
    // Predicated region
    $region30: #{tpu_custom_call.1} parent=1 // pred_check
      _
    $region31: #{tpu_custom_call.1} parent=1 // pred_check_branch
      %57 = sbr.rel (0) target = $region33
    $region32: #{tpu_custom_call.1} parent=1 // pred_region
      %58 = dma.done [#allocation5], 512
    $region33: #{tpu_custom_call.1} parent=1 // pred_fallthru
      _
    %v59 = vld [vmem:[#allocation2] sm:$0xff]
    %v60 = vld [vmem:[#allocation4] sm:$0xff]
    %v61 = vld [vmem:[#allocation4 + $0x8] sm:$0xff]
    %v62 = vld [vmem:[%s2] sm:$0x1]
    %v64 = vlaneseq
    %v65 = vshrl.u32 %v64, 7
    %v66 = vsub.s32 0, %v65
    %v67 = vrot.slane %v62, %v66
    %vm69 = vcmask 130048
    %v71 = vsel %vm69, %v59, 0
    %73 = vmatprep.subr.mxu0 0.0
    %74 = vmatpush1.msra.mxu0 0.0
    %75 = vmatprep.subr.mxu0 0.0
    %76 = vmatpush1.msra.mxu0 0.0
    %77 = vmatprep.subr.mxu0 0.0
    %78 = vmatpush1.msra.mxu0 0.0
    %79 = vmatprep.subr.mxu0 0.0
    %80 = vmatpush1.msra.mxu0 0.0
    %81 = vmatprep.subr.mxu0 0.0
    %82 = vmatpush1.msra.mxu0 0.0
    %83 = vmatprep.subr.mxu0 0.0
    %84 = vmatpush1.msra.mxu0 0.0
    %85 = vmatprep.subr.mxu0 0.0
    %86 = vmatpush1.msra.mxu0 0.0
    %87 = vmatprep.subr.mxu0 0.0
    %88 = vmatpush1.msra.mxu0 0.0
    %89 = vmatprep.subr.mxu0 0.0
    %90 = vmatpush1.msra.mxu0 0.0
    %91 = vmatprep.subr.mxu0 0.0
    %92 = vmatpush1.msra.mxu0 0.0
    %93 = vmatprep.subr.mxu0 0.0
    %94 = vmatpush1.msra.mxu0 0.0
    %95 = vmatprep.subr.mxu0 0.0
    %96 = vmatpush1.msra.mxu0 0.0
    %97 = vmatprep.subr.mxu0 0.0
    %98 = vmatpush1.msra.mxu0 0.0
    %99 = vmatprep.subr.mxu0 0.0
    %100 = vmatpush1.msra.mxu0 0.0
    %101 = vmatprep.subr.mxu0 0.0
    %102 = vmatpush1.msra.mxu0 %v61
    %103 = vmatprep.subr.mxu0 0.0
    %104 = vmatpush1.msra.mxu0 %v60
    %105 = vmatprep.subr.mxu0 0.0
    %106 = vmatpush2.msra.mxu0 0.0
    %107 = vmatprep.subr.mxu0 0.0
    %108 = vmatpush2.msra.mxu0 0.0
    %109 = vmatprep.subr.mxu0 0.0
    %110 = vmatpush2.msra.mxu0 0.0
    %111 = vmatprep.subr.mxu0 0.0
    %112 = vmatpush2.msra.mxu0 0.0
    %113 = vmatprep.subr.mxu0 0.0
    %114 = vmatpush2.msra.mxu0 0.0
    %115 = vmatprep.subr.mxu0 0.0
    %116 = vmatpush2.msra.mxu0 0.0
    %117 = vmatprep.subr.mxu0 0.0
    %118 = vmatpush2.msra.mxu0 0.0
    %119 = vmatprep.subr.mxu0 0.0
    %120 = vmatpush2.msra.mxu0 0.0
    %121 = vmatprep.subr.mxu0 0.0
    %122 = vmatpush2.msra.mxu0 0.0
    %123 = vmatprep.subr.mxu0 0.0
    %124 = vmatpush2.msra.mxu0 0.0
    %125 = vmatprep.subr.mxu0 0.0
    %126 = vmatpush2.msra.mxu0 0.0
    %127 = vmatprep.subr.mxu0 0.0
    %128 = vmatpush2.msra.mxu0 0.0
    %129 = vmatprep.subr.mxu0 0.0
    %130 = vmatpush2.msra.mxu0 0.0
    %131 = vmatprep.subr.mxu0 0.0
    %132 = vmatpush2.msra.mxu0 0.0
    %133 = vmatprep.subr.mxu0 0.0
    %134 = vmatpush2.msra.mxu0 0.0
    %135 = vmatprep.subr.mxu0 0.0
    %136 = vmatpush2.msra.mxu0 0.0
    %137 = vmatprep.mubr.f32.mxu0 0.0
    %138 = vmatmul.mubr.f32.gmra.mxu0 %v71
    %v139 = vpop.f32.mrf.mxu0
    %v140 = vadd.f32 %v67, %v139
    %v141 = vpop.f32.mrf.mxu0
    %142 = vdwg.mxu0
    %v143 = vmax.f32 %v140, 0.0
    %v144 = vld [vmem:[#allocation6] sm:$0xff]
    %v145 = vld [vmem:[#allocation6 + $0x8] sm:$0xff]
    %v146 = vld [vmem:[#allocation6 + $0x10] sm:$0xff]
    %v147 = vld [vmem:[#allocation6 + $0x18] sm:$0xff]
    %v148 = vld [vmem:[%s4] sm:$0x1]
    %v150 = vlaneseq
    %v151 = vshrl.u32 %v150, 7
    %v152 = vsub.s32 0, %v151
    %v153 = vrot.slane %v148, %v152
    %vm155 = vcmask 261120
    %v157 = vsel %vm155, %v143, 0
    %159 = vmatprep.subr.mxu0 0.0
    %160 = vmatpush1.msra.mxu0 0.0
    %161 = vmatprep.subr.mxu0 0.0
    %162 = vmatpush1.msra.mxu0 0.0
    %163 = vmatprep.subr.mxu0 0.0
    %164 = vmatpush1.msra.mxu0 0.0
    %165 = vmatprep.subr.mxu0 0.0
    %166 = vmatpush1.msra.mxu0 0.0
    %167 = vmatprep.subr.mxu0 0.0
    %168 = vmatpush1.msra.mxu0 0.0
    %169 = vmatprep.subr.mxu0 0.0
    %170 = vmatpush1.msra.mxu0 0.0
    %171 = vmatprep.subr.mxu0 0.0
    %172 = vmatpush1.msra.mxu0 0.0
    %173 = vmatprep.subr.mxu0 0.0
    %174 = vmatpush1.msra.mxu0 0.0
    %175 = vmatprep.subr.mxu0 0.0
    %176 = vmatpush1.msra.mxu0 0.0
    %177 = vmatprep.subr.mxu0 0.0
    %178 = vmatpush1.msra.mxu0 0.0
    %179 = vmatprep.subr.mxu0 0.0
    %180 = vmatpush1.msra.mxu0 0.0
    %181 = vmatprep.subr.mxu0 0.0
    %182 = vmatpush1.msra.mxu0 0.0
    %183 = vmatprep.subr.mxu0 0.0
    %184 = vmatpush1.msra.mxu0 %v147
    %185 = vmatprep.subr.mxu0 0.0
    %186 = vmatpush1.msra.mxu0 %v146
    %187 = vmatprep.subr.mxu0 0.0
    %188 = vmatpush1.msra.mxu0 %v145
    %189 = vmatprep.subr.mxu0 0.0
    %190 = vmatpush1.msra.mxu0 %v144
    %191 = vmatprep.subr.mxu0 0.0
    %192 = vmatpush2.msra.mxu0 0.0
    %193 = vmatprep.subr.mxu0 0.0
    %194 = vmatpush2.msra.mxu0 0.0
    %195 = vmatprep.subr.mxu0 0.0
    %196 = vmatpush2.msra.mxu0 0.0
    %197 = vmatprep.subr.mxu0 0.0
    %198 = vmatpush2.msra.mxu0 0.0
    %199 = vmatprep.subr.mxu0 0.0
    %200 = vmatpush2.msra.mxu0 0.0
    %201 = vmatprep.subr.mxu0 0.0
    %202 = vmatpush2.msra.mxu0 0.0
    %203 = vmatprep.subr.mxu0 0.0
    %204 = vmatpush2.msra.mxu0 0.0
    %205 = vmatprep.subr.mxu0 0.0
    %206 = vmatpush2.msra.mxu0 0.0
    %207 = vmatprep.subr.mxu0 0.0
    %208 = vmatpush2.msra.mxu0 0.0
    %209 = vmatprep.subr.mxu0 0.0
    %210 = vmatpush2.msra.mxu0 0.0
    %211 = vmatprep.subr.mxu0 0.0
    %212 = vmatpush2.msra.mxu0 0.0
    %213 = vmatprep.subr.mxu0 0.0
    %214 = vmatpush2.msra.mxu0 0.0
    %215 = vmatprep.subr.mxu0 0.0
    %216 = vmatpush2.msra.mxu0 0.0
    %217 = vmatprep.subr.mxu0 0.0
    %218 = vmatpush2.msra.mxu0 0.0
    %219 = vmatprep.subr.mxu0 0.0
    %220 = vmatpush2.msra.mxu0 0.0
    %221 = vmatprep.subr.mxu0 0.0
    %222 = vmatpush2.msra.mxu0 0.0
    %223 = vmatprep.mubr.f32.mxu0 0.0
    %224 = vmatmul.mubr.f32.gmra.mxu0 %v157
    %v225 = vpop.f32.mrf.mxu0
    %v226 = vadd.f32 %v153, %v225
    %v227 = vpop.f32.mrf.mxu0
    %228 = vdwg.mxu0
    %vm229 = vcmask 31744
    %230 = vst.msk [vmem:[%s5] sm:$0xff] %vm229, %v226
    // Predicated region
    $region34: #{tpu_custom_call.1} parent=1 // pred_check
      _
    $region35: #{tpu_custom_call.1} parent=1 // pred_check_branch
      %232 = sbr.rel (0) target = $region37
    $region36: #{tpu_custom_call.1} parent=1 // pred_region
      _
    $region37: #{tpu_custom_call.1} parent=1 // pred_fallthru
      _
    // Predicated region
    $region38: #{tpu_custom_call.1} parent=1 // pred_check
      _
    $region39: #{tpu_custom_call.1} parent=1 // pred_check_branch
      %234 = sbr.rel (0) target = $region41
    $region40: #{tpu_custom_call.1} parent=1 // pred_region
      _
    $region41: #{tpu_custom_call.1} parent=1 // pred_fallthru
      _
    %235 = vsyncpa [#allocation3], 1
    %236 = vsyncpa [#allocation5], 1

</llo_original>
